<compile_context>
chip_gen: v7x
topology: tpu7x:2x2x1
jax: 0.10.0
libtpu: 0.0.40
codegen_flags: <defaults>
</compile_context>

<pallas_src>
import numpy as np
import jax
import jax.numpy as jnp
from jax.experimental import pallas as pl
from jax.experimental.pallas import tpu as pltpu

# ----- config (small shapes, consistent with the module's forward) -----
iS = 32            # word-embedding size   (module default 300)
hS = 32            # hidden size           (module default 100)
lS = 2             # LSTM layers
n_cond_ops = 3
mL_w = 4           # max number of where-clauses (module constant)
HP = 128           # hidden dim zero-padded to a full 128-lane vreg
MLW_P = 8          # mL_w zero-padded to a full (8,128) sublane tile
NCP = 128          # n_cond_ops padded to a full 128-lane output slab


# ----------------------------------------------------------------------
# Plain-JAX glue: bidirectional multi-layer LSTM (dropout is a no-op at eval)
# TODO(synk): the packed-sequence LSTM encoders have no clean Pallas
# equivalent; they stay as lax.scan outside the kernel.
# ----------------------------------------------------------------------
def _run_dir(xd, Wih, Whh, bih, bhh):
    """xd: [B, T, in] -> outputs [B, T, h] (single direction)."""
    B = xd.shape[0]
    h_sz = Wih.shape[0] // 4

    def step(carry, x_t):
        h, c = carry
        gates = x_t @ Wih.T + h @ Whh.T + bih + bhh
        i, f, g, o = jnp.split(gates, 4, axis=-1)
        i = jax.nn.sigmoid(i)
        f = jax.nn.sigmoid(f)
        g = jnp.tanh(g)
        o = jax.nn.sigmoid(o)
        c = f * c + i * g
        h = o * jnp.tanh(c)
        return (h, c), h

    h0 = jnp.zeros((B, h_sz), xd.dtype)
    _, hs = jax.lax.scan(step, (h0, h0), jnp.swapaxes(xd, 0, 1))
    return jnp.swapaxes(hs, 0, 1)


def bilstm(params, x, lengths):
    """params: [layer][dir] = (Wih, Whh, bih, bhh).  x: [B, T, in].
    Returns [B, T, 2*h] with zeros beyond `lengths` (matches pad_packed)."""
    B, T, _ = x.shape
    t_idx = jnp.arange(T)
    valid = (t_idx[None, :] < lengths[:, None]).astype(x.dtype)          # [B,T]
    rev_idx = jnp.clip(lengths[:, None] - 1 - t_idx[None, :], 0, T - 1)  # [B,T]

    inp = x
    for layer_p in params:
        out_f = _run_dir(inp, *layer_p[0])
        x_rev = jnp.take_along_axis(inp, rev_idx[:, :, None], axis=1)
        out_b_rev = _run_dir(x_rev, *layer_p[1])
        out_b = jnp.take_along_axis(out_b_rev, rev_idx[:, :, None], axis=1)
        inp = jnp.concatenate([out_f, out_b], axis=-1) * valid[:, :, None]
    return inp


def encode_hpu_jax(lstm_params, wemb_hpu, l_hpu, l_hs):
    """encode_hpu: encode each header token-seq, take last output, repack per
    batch element with a device gather (no host round-trip)."""
    l_hpu = np.asarray(l_hpu, np.int32)
    out = bilstm(lstm_params, wemb_hpu, jnp.asarray(l_hpu))
    last = out[jnp.arange(out.shape[0]), jnp.asarray(l_hpu - 1)]      # [n_hpu, hS]

    bS, mL_hs = len(l_hs), max(l_hs)
    starts = np.cumsum([0] + list(l_hs[:-1]))
    idx = np.zeros((bS, mL_hs), np.int32)
    valid = np.zeros((bS, mL_hs, 1), np.float32)
    for b, l1 in enumerate(l_hs):
        idx[b, :l1] = starts[b] + np.arange(l1)
        valid[b, :l1, 0] = 1.0
    wenc_hs = jnp.take(last, jnp.asarray(idx), axis=0) * jnp.asarray(valid)
    return wenc_hs                                                    # [bS, mL_hs, hS]


def build_hs_ob(wenc_hs, wc, wn):
    """Select wc[b] columns, pad with column 0 up to mL_w (per reference loop).
    Index table built on host from Python lists; gather stays on device."""
    bS = wenc_hs.shape[0]
    idx = np.zeros((bS, mL_w), np.int32)
    for b in range(bS):
        for i in range(mL_w):
            idx[b, i] = wc[b][i] if i < wn[b] else 0
    return wenc_hs[jnp.arange(bS)[:, None], jnp.asarray(idx)]         # [bS, mL_w, hS]


# ----------------------------------------------------------------------
# Pallas kernel: attention + mask + softmax + context + folded MLP
# One grid step = one batch-block of TB elements.
# ----------------------------------------------------------------------
def wop_kernel(wenc_ref,    # [TB, mLnP, HP]   bf16
               hs_ref,      # [TB, MLW_P, HP]  bf16
               mask_ref,    # [TB, 1, mLnP]    f32 additive length mask
               watt_ref,    # [HP, HP]  bf16   W_att^T (lane-padded)
               batt_ref,    # [1, HP]   f32
               wa_ref,      # [HP, HP]  bf16   A = (W1[:, :h] @ W_c)^T (padded)
               wb_ref,      # [HP, HP]  bf16   B = (W1[:, h:] @ W_hs)^T (padded)
               bfold_ref,   # [1, HP]   f32    folded MLP bias
               w2_ref,      # [HP, NCP] bf16   W2^T (padded to 128 lanes)
               b2_ref,      # [1, NCP]  f32
               out_ref):    # [TB, MLW_P, NCP] f32
    f32, bf16 = jnp.float32, jnp.bfloat16
    TB, mLn, hp = wenc_ref.shape
    mLw = hs_ref.shape[1]
    M = TB * mLw

    wenc = wenc_ref[...]                       # bf16 [TB, mLn, HP]
    hs = hs_ref[...]                           # bf16 [TB, mLw, HP]
    # Fold the batch into the MXU M dimension. The merges are done on f32
    # values so they are tile-aligned (8,128) views; bf16 only at MXU inputs.
    wenc_flat = wenc.astype(f32).reshape(TB * mLn, hp).astype(bf16)
    hs_flat = hs.astype(f32).reshape(M, hp).astype(bf16)

    # x_att = W_att(wenc_n) for every question token of the block.
    x_att = (jnp.dot(wenc_flat, watt_ref[...], preferred_element_type=f32)
             + batt_ref[...])                  # f32 [TB*mLn, HP]
    x_att = x_att.reshape(TB, mLn, hp).astype(bf16)

    # att[b, w, t] = <hs[b, w], W_att(wenc[b, t])>   (batched over b)
    att = jax.lax.dot_general(hs, x_att, (((2,), (2,)), ((0,), (0,))),
                              preferred_element_type=f32)   # f32 [TB, mLw, mLn]
    att = att + mask_ref[...]                  # additive length mask

    # softmax over the question axis (f32 VPU/EUP math; EUP reciprocal).
    att_max = jnp.max(att, axis=2, keepdims=True)
    e = jnp.exp(att - att_max)
    p = e * pl.reciprocal(jnp.sum(e, axis=2, keepdims=True), approx=True)

    # context: c_n[b, w] = sum_t p[b, w, t] * wenc[b, t]
    c_n = jax.lax.dot_general(p.astype(bf16), wenc,
                              (((2,), (1,)), ((0,), (0,))),
                              preferred_element_type=f32)   # f32 [TB, mLw, HP]

    # Folded MLP:  s = tanh(c_n @ A + hs @ B + b_fold) @ W2 + b2
    h1 = jnp.tanh(
        jnp.dot(c_n.reshape(M, hp).astype(bf16), wa_ref[...],
                preferred_element_type=f32)
        + jnp.dot(hs_flat, wb_ref[...], preferred_element_type=f32)
        + bfold_ref[...])                      # f32 [M, HP]
    s = (jnp.dot(h1.astype(bf16), w2_ref[...], preferred_element_type=f32)
         + b2_ref[...])                        # f32 [M, NCP]
    out_ref[...] = s.reshape(TB, mLw, out_ref.shape[2])


def wop_pallas(wenc_n, hs_ob, l_n, kp, tb=128, min_blocks=1):
    """wenc_n: [bS, mL_n, hS] f32, hs_ob: [bS, mL_w, hS] f32, l_n: [bS] int32.
    Returns s_wo: [bS, mL_w, n_cond_ops] f32.

    tb:         target batch-block size (sweep 64-256 for real batch sizes).
    min_blocks: keep the grid at >= this many blocks (pass 2 on v7x so the
                "parallel" grid axis shards across both TensorCores)."""
    bS, mL_n, H = wenc_n.shape
    mLw = hs_ob.shape[1]
    assert H <= HP and mLw <= MLW_P

    mLnP = 8 * pl.cdiv(mL_n, 8)                 # sublane-tile the question axis

    # Host-side layout prep: lane-pad H -> 128, sublane-pad mL_w -> 8, bf16.
    wenc_p = jnp.pad(wenc_n, ((0, 0), (0, mLnP - mL_n), (0, HP - H))
                     ).astype(jnp.bfloat16)
    hs_p = jnp.pad(hs_ob, ((0, 0), (0, MLW_P - mLw), (0, HP - H))
                   ).astype(jnp.bfloat16)

    # Additive length mask (also covers mLnP padding): [bS, 1, mLnP] f32.
    t_idx = jnp.arange(mLnP, dtype=jnp.int32)
    mask = jnp.where(t_idx[None, :] < l_n[:, None], 0.0, -1e10)
    mask = mask.astype(jnp.float32)[:, None, :]

    # Batch blocking. No full-tensor batch pad: the ragged tail block relies
    # on Pallas boundary handling (OOB reads feed only discarded output rows).
    nb = max(min_blocks, pl.cdiv(bS, min(tb, bS)))
    nb = min(nb, bS)
    TB = pl.cdiv(bS, nb)

    def inv(shape):                             # grid-invariant (weight) block
        return pl.BlockSpec(shape, lambda i: (0, 0))

    grid_spec = pltpu.PrefetchScalarGridSpec(
        num_scalar_prefetch=0,
        grid=(nb,),
        in_specs=[
            pl.BlockSpec((TB, mLnP, HP), lambda i: (i, 0, 0)),
            pl.BlockSpec((TB, MLW_P, HP), lambda i: (i, 0, 0)),
            pl.BlockSpec((TB, 1, mLnP), lambda i: (i, 0, 0)),
            inv((HP, HP)), inv((1, HP)),
            inv((HP, HP)), inv((HP, HP)), inv((1, HP)),
            inv((HP, NCP)), inv((1, NCP)),
        ],
        out_specs=pl.BlockSpec((TB, MLW_P, NCP), lambda i: (i, 0, 0)),
    )

    out = pl.pallas_call(
        wop_kernel,
        out_shape=jax.ShapeDtypeStruct((bS, MLW_P, NCP), jnp.float32),
        grid_spec=grid_spec,
        compiler_params=pltpu.CompilerParams(
            dimension_semantics=("parallel",),   # blocks shard across v7x TCs
        ),
    )(wenc_p, hs_p, mask,
      kp['W_att_T'], kp['b_att'],
      kp['A'], kp['B'], kp['b_fold'],
      kp['W2p_T'], kp['b2p'])

    return out[:, :mLw, :n_cond_ops]


def pack_params(W_att, b_att, W_c, b_c, W_hs, b_hs, W1, b1, W2, b2):
    """Host-side weight prep: lane-pad to HP=128; fold W1 o [W_c | W_hs] into
    two HxH matrices A, B + one bias (exact linear-algebra identity); bf16
    matrices / f32 biases; W2 zero-padded to a lane-dense NCP=128 slab."""
    h = W_att.shape[0]
    f32, bf16 = jnp.float32, jnp.bfloat16

    def pad_mat(m, rows=HP, cols=HP):
        z = jnp.zeros((rows, cols), f32)
        return z.at[:m.shape[0], :m.shape[1]].set(m.astype(f32))

    def pad_vec(v, cols=HP):
        z = jnp.zeros((1, cols), f32)
        return z.at[0, :v.shape[0]].set(v.astype(f32))

    A = (W1[:, :h] @ W_c).T                        # c_n @ A  == (c_n Wc^T) W1c^T
    B = (W1[:, h:] @ W_hs).T                       # hs  @ B  == (hs  Whs^T) W1h^T
    b_fold = b_c @ W1[:, :h].T + b_hs @ W1[:, h:].T + b1

    return dict(
        W_att_T=pad_mat(W_att.T).astype(bf16),
        b_att=pad_vec(b_att),
        A=pad_mat(A).astype(bf16),
        B=pad_mat(B).astype(bf16),
        b_fold=pad_vec(b_fold),
        W2p_T=pad_mat(W2.T, HP, NCP).astype(bf16),
        b2p=pad_vec(b2, NCP),
    )


# ----------------------------------------------------------------------
# pure-JAX f32 reference of the hot path (for correctness checks)
# ----------------------------------------------------------------------
def wop_ref_jax(wenc_n, hs_ob, l_n, W_att, b_att, W_c, b_c, W_hs, b_hs, W1, b1, W2, b2):
    mL_n = wenc_n.shape[1]
    x_att = wenc_n @ W_att.T + b_att
    att = jnp.einsum('bih,bth->bit', hs_ob, x_att)
    msk = jnp.arange(mL_n)[None, None, :] >= l_n[:, None, None]
    att = jnp.where(msk, -1e10, att)
    p = jax.nn.softmax(att, axis=2)
    c_n = jnp.einsum('bit,bth->bih', p, wenc_n)
    vec = jnp.concatenate([c_n @ W_c.T + b_c, hs_ob @ W_hs.T + b_hs], axis=2)
    return jnp.tanh(vec @ W1.T + b1) @ W2.T + b2


# ----------------------------------------------------------------------
# deterministic parameter init (synthetic weights, PyTorch-like shapes)
# ----------------------------------------------------------------------
def init_linear(key, out_f, in_f):
    k1, k2 = jax.random.split(key)
    bound = 1.0 / np.sqrt(in_f)
    W = jax.random.uniform(k1, (out_f, in_f), jnp.float32, -bound, bound)
    b = jax.random.uniform(k2, (out_f,), jnp.float32, -bound, bound)
    return W, b


def init_lstm(key, in_size, hidden, num_layers):
    params = []
    for layer in range(num_layers):
        layer_in = in_size if layer == 0 else 2 * hidden
        dirs = []
        for _d in range(2):
            key, k1, k2, k3, k4 = jax.random.split(key, 5)
            bound = 1.0 / np.sqrt(hidden)
            Wih = jax.random.uniform(k1, (4 * hidden, layer_in), jnp.float32, -bound, bound)
            Whh = jax.random.uniform(k2, (4 * hidden, hidden), jnp.float32, -bound, bound)
            bih = jax.random.uniform(k3, (4 * hidden,), jnp.float32, -bound, bound)
            bhh = jax.random.uniform(k4, (4 * hidden,), jnp.float32, -bound, bound)
            dirs.append((Wih, Whh, bih, bhh))
        params.append(dirs)
    return params, key


if __name__ == "__main__":
    key = jax.random.PRNGKey(0)

    # small example consistent with WOP.forward
    bS, mL_n = 2, 8
    l_n = [8, 6]                           # question lengths
    l_hs = [3, 2]                          # headers per batch element
    l_hpu = [2, 4, 1, 3, 2]                # token length of each header
    mL_hpu = 4
    wn = [2, 1]                            # number of where-clauses
    wc = [[1, 2], [0]]                     # selected where-columns

    key, k1, k2 = jax.random.split(key, 3)
    wemb_n = jax.random.normal(k1, (bS, mL_n, iS), jnp.float32)
    wemb_hpu = jax.random.normal(k2, (sum(l_hs), mL_hpu, iS), jnp.float32)

    # parameters
    enc_n_params, key = init_lstm(key, iS, hS // 2, lS)
    enc_h_params, key = init_lstm(key, iS, hS // 2, lS)
    key, ka, kb, kc, kd, ke = jax.random.split(key, 6)
    W_att, b_att = init_linear(ka, hS, hS)
    W_c, b_c = init_linear(kb, hS, hS)
    W_hs, b_hs = init_linear(kc, hS, hS)
    W1, b1 = init_linear(kd, hS, 2 * hS)      # wo_out[0]
    W2, b2 = init_linear(ke, n_cond_ops, hS)  # wo_out[2]
    kp = pack_params(W_att, b_att, W_c, b_c, W_hs, b_hs, W1, b1, W2, b2)

    # encoders (dropout is identity at eval time)
    l_n_arr = jnp.asarray(l_n, jnp.int32)
    wenc_n = bilstm(enc_n_params, wemb_n, l_n_arr)                 # [bS, mL_n, hS]
    wenc_hs = encode_hpu_jax(enc_h_params, wemb_hpu, l_hpu, l_hs)  # [bS, max(l_hs), hS]
    hs_ob = build_hs_ob(wenc_hs, wc, wn)                           # [bS, mL_w, hS]

    # Pallas hot path (single batch-block). Tolerance is 2e-2 because the
    # kernel stores activations/weights in bf16 (f32 accumulation).
    s_wo = jax.block_until_ready(wop_pallas(wenc_n, hs_ob, l_n_arr, kp))
    ref = wop_ref_jax(wenc_n, hs_ob, l_n_arr,
                      W_att, b_att, W_c, b_c, W_hs, b_hs, W1, b1, W2, b2)
    assert s_wo.shape == (bS, mL_w, n_cond_ops)
    assert np.allclose(np.asarray(s_wo), np.asarray(ref), rtol=2e-2, atol=2e-2)

    # second check: multi-block grid with a ragged tail block (bS=11 -> nb=2,
    # TB=6, last block handles one out-of-bounds row) + v7x-style min_blocks=2.
    bS2, mL_n2 = 11, 16
    key, k3, k4, k5 = jax.random.split(key, 4)
    wenc_n2 = jax.random.normal(k3, (bS2, mL_n2, hS), jnp.float32)
    hs_ob2 = jax.random.normal(k4, (bS2, mL_w, hS), jnp.float32)
    l_n2 = jax.random.randint(k5, (bS2,), 1, mL_n2 + 1).astype(jnp.int32)

    s_wo2 = jax.block_until_ready(
        wop_pallas(wenc_n2, hs_ob2, l_n2, kp, tb=128, min_blocks=2))
    ref2 = wop_ref_jax(wenc_n2, hs_ob2, l_n2,
                       W_att, b_att, W_c, b_c, W_hs, b_hs, W1, b1, W2, b2)
    assert s_wo2.shape == (bS2, mL_w, n_cond_ops)
    assert np.allclose(np.asarray(s_wo2), np.asarray(ref2), rtol=2e-2, atol=2e-2)

    print("KERNEL_OK")
</pallas_src>

<mosaic_0001>
module attributes {stable_mosaic.version = 11 : i64} {
  func.func @wop_kernel(%arg0: i32, %arg1: memref<2x8x128xbf16, #tpu.memory_space<vmem>>, %arg2: memref<2x8x128xbf16, #tpu.memory_space<vmem>>, %arg3: memref<2x1x8xf32, #tpu.memory_space<vmem>>, %arg4: memref<128x128xbf16, #tpu.memory_space<vmem>>, %arg5: memref<1x128xf32, #tpu.memory_space<vmem>>, %arg6: memref<128x128xbf16, #tpu.memory_space<vmem>>, %arg7: memref<128x128xbf16, #tpu.memory_space<vmem>>, %arg8: memref<1x128xf32, #tpu.memory_space<vmem>>, %arg9: memref<128x128xbf16, #tpu.memory_space<vmem>>, %arg10: memref<1x128xf32, #tpu.memory_space<vmem>>, %arg11: memref<2x8x128xf32, #tpu.memory_space<vmem>>) attributes {dimension_semantics = [#tpu.dimension_semantics<parallel>], iteration_bounds = array<i64: 1>, scalar_prefetch = 0 : i64, scratch_operands = 0 : i64, tpu.core_type = #tpu.core_type<tc>, window_params = [{transform_indices = @transform_0, window_bounds = array<i64: 2, 8, 128>}, {transform_indices = @transform_1, window_bounds = array<i64: 2, 8, 128>}, {transform_indices = @transform_2, window_bounds = array<i64: 2, 1, 8>}, {pipeline_mode = #tpu.pipeline_mode<synchronous>, transform_indices = @transform_3, window_bounds = array<i64: 128, 128>}, {pipeline_mode = #tpu.pipeline_mode<synchronous>, transform_indices = @transform_4, window_bounds = array<i64: 1, 128>}, {pipeline_mode = #tpu.pipeline_mode<synchronous>, transform_indices = @transform_5, window_bounds = array<i64: 128, 128>}, {pipeline_mode = #tpu.pipeline_mode<synchronous>, transform_indices = @transform_6, window_bounds = array<i64: 128, 128>}, {pipeline_mode = #tpu.pipeline_mode<synchronous>, transform_indices = @transform_7, window_bounds = array<i64: 1, 128>}, {pipeline_mode = #tpu.pipeline_mode<synchronous>, transform_indices = @transform_8, window_bounds = array<i64: 128, 128>}, {pipeline_mode = #tpu.pipeline_mode<synchronous>, transform_indices = @transform_9, window_bounds = array<i64: 1, 128>}, {transform_indices = @transform_10, window_bounds = array<i64: 2, 8, 128>}]} {
    %c0 = arith.constant 0 : index
    %c0_0 = arith.constant 0 : index
    %c0_1 = arith.constant 0 : index
    %0 = vector.load %arg1[%c0, %c0_0, %c0_1] : memref<2x8x128xbf16, #tpu.memory_space<vmem>>, vector<2x8x128xbf16>
    %c0_2 = arith.constant 0 : index
    %c0_3 = arith.constant 0 : index
    %c0_4 = arith.constant 0 : index
    %1 = vector.load %arg2[%c0_2, %c0_3, %c0_4] : memref<2x8x128xbf16, #tpu.memory_space<vmem>>, vector<2x8x128xbf16>
    %2 = arith.extf %0 : vector<2x8x128xbf16> to vector<2x8x128xf32>
    %3 = vector.shape_cast %2 : vector<2x8x128xf32> to vector<16x128xf32>
    %4 = arith.truncf %3 : vector<16x128xf32> to vector<16x128xbf16>
    %5 = arith.extf %1 : vector<2x8x128xbf16> to vector<2x8x128xf32>
    %6 = vector.shape_cast %5 : vector<2x8x128xf32> to vector<16x128xf32>
    %7 = arith.truncf %6 : vector<16x128xf32> to vector<16x128xbf16>
    %c0_5 = arith.constant 0 : index
    %c0_6 = arith.constant 0 : index
    %8 = vector.load %arg4[%c0_5, %c0_6] : memref<128x128xbf16, #tpu.memory_space<vmem>>, vector<128x128xbf16>
    %cst = arith.constant dense<0.000000e+00> : vector<16x128xf32>
    %9 = tpu.matmul %4, %8, %cst {dimension_numbers = #tpu.dot_dimension_numbers<[1], [0], [0], [1], [0, 0, 1, 1], [], []>} : vector<16x128xbf16>, vector<128x128xbf16>, vector<16x128xf32> -> vector<16x128xf32>
    %c0_7 = arith.constant 0 : index
    %c0_8 = arith.constant 0 : index
    %10 = vector.load %arg5[%c0_7, %c0_8] : memref<1x128xf32, #tpu.memory_space<vmem>>, vector<1x128xf32>
    %11 = vector.broadcast %10 : vector<1x128xf32> to vector<16x128xf32>
    %12 = arith.addf %9, %11 : vector<16x128xf32>
    %13 = vector.shape_cast %12 : vector<16x128xf32> to vector<2x8x128xf32>
    %14 = arith.truncf %13 : vector<2x8x128xf32> to vector<2x8x128xbf16>
    %cst_9 = arith.constant dense<0.000000e+00> : vector<2x8x8xf32>
    %15 = tpu.matmul %1, %14, %cst_9 {dimension_numbers = #tpu.dot_dimension_numbers<[2], [2], [1], [1], [0, 0, 0, 1, 1, 1], [0], [0]>} : vector<2x8x128xbf16>, vector<2x8x128xbf16>, vector<2x8x8xf32> -> vector<2x8x8xf32>
    %c0_10 = arith.constant 0 : index
    %c0_11 = arith.constant 0 : index
    %c0_12 = arith.constant 0 : index
    %16 = vector.load %arg3[%c0_10, %c0_11, %c0_12] : memref<2x1x8xf32, #tpu.memory_space<vmem>>, vector<2x1x8xf32>
    %17 = vector.broadcast %16 : vector<2x1x8xf32> to vector<2x8x8xf32>
    %18 = arith.addf %15, %17 : vector<2x8x8xf32>
    %cst_13 = arith.constant dense<0xFF800000> : vector<2x8xf32>
    %19 = vector.multi_reduction <maximumf>, %18, %cst_13 [2] : vector<2x8x8xf32> to vector<2x8xf32>
    %20 = vector.shape_cast %19 : vector<2x8xf32> to vector<2x8x1xf32>
    %21 = vector.broadcast %20 : vector<2x8x1xf32> to vector<2x8x8xf32>
    %22 = arith.subf %18, %21 : vector<2x8x8xf32>
    %23 = math.exp %22 : vector<2x8x8xf32>
    %cst_14 = arith.constant dense<0.000000e+00> : vector<2x8xf32>
    %24 = vector.multi_reduction <add>, %23, %cst_14 [2] : vector<2x8x8xf32> to vector<2x8xf32>
    %25 = vector.shape_cast %24 : vector<2x8xf32> to vector<2x8x1xf32>
    %26 = tpu.reciprocal %25 {approx = true} : vector<2x8x1xf32> -> vector<2x8x1xf32>
    %27 = vector.broadcast %26 : vector<2x8x1xf32> to vector<2x8x8xf32>
    %28 = arith.mulf %23, %27 : vector<2x8x8xf32>
    %29 = arith.truncf %28 : vector<2x8x8xf32> to vector<2x8x8xbf16>
    %cst_15 = arith.constant dense<0.000000e+00> : vector<2x8x128xf32>
    %30 = tpu.matmul %29, %0, %cst_15 {dimension_numbers = #tpu.dot_dimension_numbers<[2], [1], [1], [2], [0, 0, 0, 1, 1, 2], [0], [0]>} : vector<2x8x8xbf16>, vector<2x8x128xbf16>, vector<2x8x128xf32> -> vector<2x8x128xf32>
    %31 = vector.shape_cast %30 : vector<2x8x128xf32> to vector<16x128xf32>
    %32 = arith.truncf %31 : vector<16x128xf32> to vector<16x128xbf16>
    %c0_16 = arith.constant 0 : index
    %c0_17 = arith.constant 0 : index
    %33 = vector.load %arg6[%c0_16, %c0_17] : memref<128x128xbf16, #tpu.memory_space<vmem>>, vector<128x128xbf16>
    %cst_18 = arith.constant dense<0.000000e+00> : vector<16x128xf32>
    %34 = tpu.matmul %32, %33, %cst_18 {dimension_numbers = #tpu.dot_dimension_numbers<[1], [0], [0], [1], [0, 0, 1, 1], [], []>} : vector<16x128xbf16>, vector<128x128xbf16>, vector<16x128xf32> -> vector<16x128xf32>
    %c0_19 = arith.constant 0 : index
    %c0_20 = arith.constant 0 : index
    %35 = vector.load %arg7[%c0_19, %c0_20] : memref<128x128xbf16, #tpu.memory_space<vmem>>, vector<128x128xbf16>
    %cst_21 = arith.constant dense<0.000000e+00> : vector<16x128xf32>
    %36 = tpu.matmul %7, %35, %cst_21 {dimension_numbers = #tpu.dot_dimension_numbers<[1], [0], [0], [1], [0, 0, 1, 1], [], []>} : vector<16x128xbf16>, vector<128x128xbf16>, vector<16x128xf32> -> vector<16x128xf32>
    %37 = arith.addf %34, %36 : vector<16x128xf32>
    %c0_22 = arith.constant 0 : index
    %c0_23 = arith.constant 0 : index
    %38 = vector.load %arg8[%c0_22, %c0_23] : memref<1x128xf32, #tpu.memory_space<vmem>>, vector<1x128xf32>
    %39 = vector.broadcast %38 : vector<1x128xf32> to vector<16x128xf32>
    %40 = arith.addf %37, %39 : vector<16x128xf32>
    %41 = math.tanh %40 : vector<16x128xf32>
    %42 = arith.truncf %41 : vector<16x128xf32> to vector<16x128xbf16>
    %c0_24 = arith.constant 0 : index
    %c0_25 = arith.constant 0 : index
    %43 = vector.load %arg9[%c0_24, %c0_25] : memref<128x128xbf16, #tpu.memory_space<vmem>>, vector<128x128xbf16>
    %cst_26 = arith.constant dense<0.000000e+00> : vector<16x128xf32>
    %44 = tpu.matmul %42, %43, %cst_26 {dimension_numbers = #tpu.dot_dimension_numbers<[1], [0], [0], [1], [0, 0, 1, 1], [], []>} : vector<16x128xbf16>, vector<128x128xbf16>, vector<16x128xf32> -> vector<16x128xf32>
    %c0_27 = arith.constant 0 : index
    %c0_28 = arith.constant 0 : index
    %45 = vector.load %arg10[%c0_27, %c0_28] : memref<1x128xf32, #tpu.memory_space<vmem>>, vector<1x128xf32>
    %46 = vector.broadcast %45 : vector<1x128xf32> to vector<16x128xf32>
    %47 = arith.addf %44, %46 : vector<16x128xf32>
    %48 = vector.shape_cast %47 : vector<16x128xf32> to vector<2x8x128xf32>
    %c0_29 = arith.constant 0 : index
    %c0_30 = arith.constant 0 : index
    %c0_31 = arith.constant 0 : index
    %49 = vector.load %arg11[%c0_29, %c0_30, %c0_31] : memref<2x8x128xf32, #tpu.memory_space<vmem>>, vector<2x8x128xf32>
    tpu.vector_store %arg11[%c0_29, %c0_30, %c0_31], %48 {strides = array<i32>} : memref<2x8x128xf32, #tpu.memory_space<vmem>>, vector<2x8x128xf32>,
    return
  }
  func.func @transform_0(%arg0: i32) -> (i32, i32, i32) {
    %c0_i32 = arith.constant 0 : i32
    %c0_i32_0 = arith.constant 0 : i32
    %c0_i32_1 = arith.constant 0 : i32
    return %arg0, %c0_i32, %c0_i32_0 : i32, i32, i32
  }
  func.func @transform_1(%arg0: i32) -> (i32, i32, i32) {
    %c0_i32 = arith.constant 0 : i32
    %c0_i32_0 = arith.constant 0 : i32
    %c0_i32_1 = arith.constant 0 : i32
    return %arg0, %c0_i32, %c0_i32_0 : i32, i32, i32
  }
  func.func @transform_2(%arg0: i32) -> (i32, i32, i32) {
    %c0_i32 = arith.constant 0 : i32
    %c0_i32_0 = arith.constant 0 : i32
    %c0_i32_1 = arith.constant 0 : i32
    return %arg0, %c0_i32, %c0_i32_0 : i32, i32, i32
  }
  func.func @transform_3(%arg0: i32) -> (i32, i32) {
    %c0_i32 = arith.constant 0 : i32
    %c0_i32_0 = arith.constant 0 : i32
    %c0_i32_1 = arith.constant 0 : i32
    return %c0_i32, %c0_i32_0 : i32, i32
  }
  func.func @transform_4(%arg0: i32) -> (i32, i32) {
    %c0_i32 = arith.constant 0 : i32
    %c0_i32_0 = arith.constant 0 : i32
    %c0_i32_1 = arith.constant 0 : i32
    return %c0_i32, %c0_i32_0 : i32, i32
  }
  func.func @transform_5(%arg0: i32) -> (i32, i32) {
    %c0_i32 = arith.constant 0 : i32
    %c0_i32_0 = arith.constant 0 : i32
    %c0_i32_1 = arith.constant 0 : i32
    return %c0_i32, %c0_i32_0 : i32, i32
  }
  func.func @transform_6(%arg0: i32) -> (i32, i32) {
    %c0_i32 = arith.constant 0 : i32
    %c0_i32_0 = arith.constant 0 : i32
    %c0_i32_1 = arith.constant 0 : i32
    return %c0_i32, %c0_i32_0 : i32, i32
  }
  func.func @transform_7(%arg0: i32) -> (i32, i32) {
    %c0_i32 = arith.constant 0 : i32
    %c0_i32_0 = arith.constant 0 : i32
    %c0_i32_1 = arith.constant 0 : i32
    return %c0_i32, %c0_i32_0 : i32, i32
  }
  func.func @transform_8(%arg0: i32) -> (i32, i32) {
    %c0_i32 = arith.constant 0 : i32
    %c0_i32_0 = arith.constant 0 : i32
    %c0_i32_1 = arith.constant 0 : i32
    return %c0_i32, %c0_i32_0 : i32, i32
  }
  func.func @transform_9(%arg0: i32) -> (i32, i32) {
    %c0_i32 = arith.constant 0 : i32
    %c0_i32_0 = arith.constant 0 : i32
    %c0_i32_1 = arith.constant 0 : i32
    return %c0_i32, %c0_i32_0 : i32, i32
  }
  func.func @transform_10(%arg0: i32) -> (i32, i32, i32) {
    %c0_i32 = arith.constant 0 : i32
    %c0_i32_0 = arith.constant 0 : i32
    %c0_i32_1 = arith.constant 0 : i32
    return %arg0, %c0_i32, %c0_i32_0 : i32, i32, i32
  }
}

</mosaic_0001>

<llo_original>
// kernel: tpu_custom_call.1
$region0: #{tpu_custom_call.1}
  #allocation0 [shape = 'u32[]', space=smem, size = 0x4, offset = 0x4, fixed_abs, tag = 'smem constant byte address 0x4 - core index']
  #allocation1 [shape = 'u32[144,128]{1,0:T(1,128)}', space=vmem, size = 0x12000, scoped, tag = 'internal scratch']
  %s0 = inlined_call_operand.hbm [shape: bf16[2,8,128], index: 0, kind: input, shape index: {}]
  %s1 = inlined_call_operand.hbm [shape: bf16[2,8,128], index: 1, kind: input, shape index: {}]
  %s2 = inlined_call_operand.vmem [shape: f32[2,1,8], index: 2, kind: input, shape index: {}]
  %s3 = inlined_call_operand.hbm [shape: bf16[128,128], index: 3, kind: input, shape index: {}]
  %s4 = inlined_call_operand.vmem [shape: f32[1,128], index: 4, kind: input, shape index: {}]
  %s5 = inlined_call_operand.hbm [shape: bf16[128,128], index: 5, kind: input, shape index: {}]
  %s6 = inlined_call_operand.hbm [shape: bf16[128,128], index: 6, kind: input, shape index: {}]
  %s7 = inlined_call_operand.vmem [shape: f32[1,128], index: 7, kind: input, shape index: {}]
  %s8 = inlined_call_operand.hbm [shape: bf16[128,128], index: 8, kind: input, shape index: {}]
  %s9 = inlined_call_operand.vmem [shape: f32[1,128], index: 9, kind: input, shape index: {}]
  %s10 = inlined_call_operand.hbm [shape: f32[2,8,128], index: 10, kind: output, shape index: {}]
  %s11 = sld [smem:[#allocation0]]
  $region74: #{tpu_custom_call.1} parent=0
    _
  %s13 = ssub.s32 1, %s11
  %s14 = scalar_select 0, %s13, %s11
  $region1: #{tpu_custom_call.1} parent=0
    #allocation2 [shape = 'u8[4096]{0}', space=vmem, size = 0x1000, scoped, tag = 'input window, operand 0, single buffered']
    #allocation3 [shape = 's32[1]{0}', space=sflag, size = 0x4, scoped, tag = 'scoped memory for tpu_custom_call.1']
    #allocation4 [shape = 's32[1]{0}', space=sflag, size = 0x4, scoped, tag = 'scoped memory for tpu_custom_call.1']
    #allocation5 [shape = 'u8[4096]{0}', space=vmem, size = 0x1000, scoped, tag = 'input window, operand 1, single buffered']
    #allocation6 [shape = 's32[1]{0}', space=sflag, size = 0x4, scoped, tag = 'scoped memory for tpu_custom_call.1']
    #allocation7 [shape = 'u8[32768]{0}', space=vmem, size = 0x8000, scoped, tag = 'input window, operand 3, single buffered']
    #allocation8 [shape = 'u8[32768]{0}', space=vmem, size = 0x8000, scoped, tag = 'input window, operand 5, single buffered']
    #allocation9 [shape = 's32[1]{0}', space=sflag, size = 0x4, scoped, tag = 'scoped memory for tpu_custom_call.1']
    #allocation10 [shape = 'u8[32768]{0}', space=vmem, size = 0x8000, scoped, tag = 'input window, operand 6, single buffered']
    #allocation11 [shape = 'u8[32768]{0}', space=vmem, size = 0x8000, scoped, tag = 'input window, operand 8, single buffered']
    #allocation12 [shape = 's32[1]{0}', space=sflag, size = 0x4, scoped, tag = 'scoped memory for tpu_custom_call.1']
    #allocation13 [shape = 'u8[8192]{0}', space=vmem, size = 0x2000, scoped, tag = 'output window, operand 0, single buffered']
    %15 = vsyncpa [#allocation3], 0
    %16 = vsyncpa [#allocation6], 0
    %17 = vsyncpa [#allocation9], 0
    %18 = vsyncpa [#allocation12], 0
    %19 = vsyncpa [#allocation4], 0
    // Predicated region
    $region2: #{tpu_custom_call.1} parent=1 // pred_check
      _
    $region3: #{tpu_custom_call.1} parent=1 // pred_check_branch
      %21 = sbr.rel (0) target = $region5
    $region4: #{tpu_custom_call.1} parent=1 // pred_region
      %s23 = ssub.s32 128, 128
      %24 = vsyncadd [#allocation3], %s23
      %s25 = sshll.u32 [#allocation2], 4
      %s26 = int_to_ptr.vmem [resolvable:$true] %s25
      %31 = dma.hbm_to_vmem [thread:$0]  %s0, 128, %s26, [#allocation3], 64, 64, 4
    $region5: #{tpu_custom_call.1} parent=1 // pred_fallthru
      _
    // Predicated region
    $region6: #{tpu_custom_call.1} parent=1 // pred_check
      _
    $region7: #{tpu_custom_call.1} parent=1 // pred_check_branch
      %33 = sbr.rel (0) target = $region9
    $region8: #{tpu_custom_call.1} parent=1 // pred_region
      %s35 = ssub.s32 128, 128
      %36 = vsyncadd [#allocation6], %s35
      %s37 = sshll.u32 [#allocation5], 4
      %s38 = int_to_ptr.vmem [resolvable:$true] %s37
      %43 = dma.hbm_to_vmem [thread:$0]  %s1, 128, %s38, [#allocation6], 64, 64, 4
    $region9: #{tpu_custom_call.1} parent=1 // pred_fallthru
      _
    // Predicated region
    $region10: #{tpu_custom_call.1} parent=1 // pred_check
      _
    $region11: #{tpu_custom_call.1} parent=1 // pred_check_branch
      %45 = sbr.rel (0) target = $region13
    $region12: #{tpu_custom_call.1} parent=1 // pred_region
      _
    $region13: #{tpu_custom_call.1} parent=1 // pred_fallthru
      _
    // Predicated region
    $region14: #{tpu_custom_call.1} parent=1 // pred_check
      _
    $region15: #{tpu_custom_call.1} parent=1 // pred_check_branch
      %47 = sbr.rel (0) target = $region17
    $region16: #{tpu_custom_call.1} parent=1 // pred_region
      %s49 = ssub.s32 1024, 1024
      %50 = vsyncadd [#allocation6], %s49
      %s51 = sshll.u32 [#allocation7], 4
      %s52 = int_to_ptr.vmem [resolvable:$true] %s51
      %57 = dma.hbm_to_vmem [thread:$0]  %s3, 1024, %s52, [#allocation6], 64, 64, 4
    $region17: #{tpu_custom_call.1} parent=1 // pred_fallthru
      _
    // Predicated region
    $region18: #{tpu_custom_call.1} parent=1 // pred_check
      _
    $region19: #{tpu_custom_call.1} parent=1 // pred_check_branch
      %59 = sbr.rel (0) target = $region21
    $region20: #{tpu_custom_call.1} parent=1 // pred_region
      _
    $region21: #{tpu_custom_call.1} parent=1 // pred_fallthru
      _
    // Predicated region
    $region22: #{tpu_custom_call.1} parent=1 // pred_check
      _
    $region23: #{tpu_custom_call.1} parent=1 // pred_check_branch
      %61 = sbr.rel (0) target = $region25
    $region24: #{tpu_custom_call.1} parent=1 // pred_region
      %s63 = ssub.s32 1024, 1024
      %64 = vsyncadd [#allocation9], %s63
      %s65 = sshll.u32 [#allocation8], 4
      %s66 = int_to_ptr.vmem [resolvable:$true] %s65
      %71 = dma.hbm_to_vmem [thread:$0]  %s5, 1024, %s66, [#allocation9], 64, 64, 4
    $region25: #{tpu_custom_call.1} parent=1 // pred_fallthru
      _
    // Predicated region
    $region26: #{tpu_custom_call.1} parent=1 // pred_check
      _
    $region27: #{tpu_custom_call.1} parent=1 // pred_check_branch
      %73 = sbr.rel (0) target = $region29
    $region28: #{tpu_custom_call.1} parent=1 // pred_region
      %s75 = ssub.s32 1024, 1024
      %76 = vsyncadd [#allocation9], %s75
      %s77 = sshll.u32 [#allocation10], 4
      %s78 = int_to_ptr.vmem [resolvable:$true] %s77
      %83 = dma.hbm_to_vmem [thread:$0]  %s6, 1024, %s78, [#allocation9], 64, 64, 4
    $region29: #{tpu_custom_call.1} parent=1 // pred_fallthru
      _
    // Predicated region
    $region30: #{tpu_custom_call.1} parent=1 // pred_check
      _
    $region31: #{tpu_custom_call.1} parent=1 // pred_check_branch
      %85 = sbr.rel (0) target = $region33
    $region32: #{tpu_custom_call.1} parent=1 // pred_region
      _
    $region33: #{tpu_custom_call.1} parent=1 // pred_fallthru
      _
    // Predicated region
    $region34: #{tpu_custom_call.1} parent=1 // pred_check
      _
    $region35: #{tpu_custom_call.1} parent=1 // pred_check_branch
      %87 = sbr.rel (0) target = $region37
    $region36: #{tpu_custom_call.1} parent=1 // pred_region
      %s89 = ssub.s32 1024, 1024
      %90 = vsyncadd [#allocation12], %s89
      %s91 = sshll.u32 [#allocation11], 4
      %s92 = int_to_ptr.vmem [resolvable:$true] %s91
      %97 = dma.hbm_to_vmem [thread:$0]  %s8, 1024, %s92, [#allocation12], 64, 64, 4
    $region37: #{tpu_custom_call.1} parent=1 // pred_fallthru
      _
    // Predicated region
    $region38: #{tpu_custom_call.1} parent=1 // pred_check
      _
    $region39: #{tpu_custom_call.1} parent=1 // pred_check_branch
      %99 = sbr.rel (0) target = $region41
    $region40: #{tpu_custom_call.1} parent=1 // pred_region
      _
    $region41: #{tpu_custom_call.1} parent=1 // pred_fallthru
      _
    // Predicated region
    $region42: #{tpu_custom_call.1} parent=1 // pred_check
      _
    $region43: #{tpu_custom_call.1} parent=1 // pred_check_branch
      %101 = sbr.rel (0) target = $region45
    $region44: #{tpu_custom_call.1} parent=1 // pred_region
      %102 = dma.done [#allocation3], 128
    $region45: #{tpu_custom_call.1} parent=1 // pred_fallthru
      _
    // Predicated region
    $region46: #{tpu_custom_call.1} parent=1 // pred_check
      _
    $region47: #{tpu_custom_call.1} parent=1 // pred_check_branch
      %104 = sbr.rel (0) target = $region49
    $region48: #{tpu_custom_call.1} parent=1 // pred_region
      %105 = dma.done [#allocation6], 128
    $region49: #{tpu_custom_call.1} parent=1 // pred_fallthru
      _
    // Predicated region
    $region50: #{tpu_custom_call.1} parent=1 // pred_check
      _
    $region51: #{tpu_custom_call.1} parent=1 // pred_check_branch
      %107 = sbr.rel (0) target = $region53
    $region52: #{tpu_custom_call.1} parent=1 // pred_region
      %108 = dma.done [#allocation6], 1024
    $region53: #{tpu_custom_call.1} parent=1 // pred_fallthru
      _
    // Predicated region
    $region54: #{tpu_custom_call.1} parent=1 // pred_check
      _
    $region55: #{tpu_custom_call.1} parent=1 // pred_check_branch
      %110 = sbr.rel (0) target = $region57
    $region56: #{tpu_custom_call.1} parent=1 // pred_region
      %111 = dma.done [#allocation9], 1024
    $region57: #{tpu_custom_call.1} parent=1 // pred_fallthru
      _
    // Predicated region
    $region58: #{tpu_custom_call.1} parent=1 // pred_check
      _
    $region59: #{tpu_custom_call.1} parent=1 // pred_check_branch
      %113 = sbr.rel (0) target = $region61
    $region60: #{tpu_custom_call.1} parent=1 // pred_region
      %114 = dma.done [#allocation9], 1024
    $region61: #{tpu_custom_call.1} parent=1 // pred_fallthru
      _
    // Predicated region
    $region62: #{tpu_custom_call.1} parent=1 // pred_check
      _
    $region63: #{tpu_custom_call.1} parent=1 // pred_check_branch
      %116 = sbr.rel (0) target = $region65
    $region64: #{tpu_custom_call.1} parent=1 // pred_region
      %117 = dma.done [#allocation12], 1024
    $region65: #{tpu_custom_call.1} parent=1 // pred_fallthru
      _
    %v119 = vld [vmem:[#allocation2] sm:$0xf]
    %v120 = vld [vmem:[#allocation2 + $0x4] sm:$0xf]
    %v121 = vld [vmem:[#allocation5] sm:$0xf]
    %v122 = vld [vmem:[#allocation5 + $0x4] sm:$0xf]
    %v123 = vunpack.c.l.bf16 %v119
    %v124 = vunpack.c.l.bf16 %v120
    %v125 = vpack.c.bf16 %v124, %v123
    %v126 = vunpack.c.l.bf16 %v121
    %v127 = vunpack.c.l.bf16 %v122
    %v128 = vpack.c.bf16 %v127, %v126
    %v129 = vld [vmem:[#allocation7] sm:$0xf]
    %v130 = vld [vmem:[#allocation7 + $0x4] sm:$0xf]
    %v131 = vld [vmem:[#allocation7 + $0x8] sm:$0xf]
    %v132 = vld [vmem:[#allocation7 + $0xc] sm:$0xf]
    %v133 = vld [vmem:[#allocation7 + $0x10] sm:$0xf]
    %v134 = vld [vmem:[#allocation7 + $0x14] sm:$0xf]
    %v135 = vld [vmem:[#allocation7 + $0x18] sm:$0xf]
    %v136 = vld [vmem:[#allocation7 + $0x1c] sm:$0xf]
    %v137 = vld [vmem:[#allocation7 + $0x20] sm:$0xf]
    %v138 = vld [vmem:[#allocation7 + $0x24] sm:$0xf]
    %v139 = vld [vmem:[#allocation7 + $0x28] sm:$0xf]
    %v140 = vld [vmem:[#allocation7 + $0x2c] sm:$0xf]
    %v141 = vld [vmem:[#allocation7 + $0x30] sm:$0xf]
    %v142 = vld [vmem:[#allocation7 + $0x34] sm:$0xf]
    %v143 = vld [vmem:[#allocation7 + $0x38] sm:$0xf]
    %v144 = vld [vmem:[#allocation7 + $0x3c] sm:$0xf]
    %v145 = vld [vmem:[%s4] sm:$0x1]
    %v147 = vlaneseq
    %v148 = vshrl.u32 %v147, 7
    %v149 = vsub.s32 0, %v148
    %v150 = vrot.slane %v145, %v149
    %v168 = vunpack.c.l.b16 %v129
    %v169 = vunpack.c.l.b16 %v130
    %v170 = vunpack.c.l.b16 %v131
    %v171 = vunpack.c.l.b16 %v132
    %v172 = vunpack.c.l.b16 %v133
    %v173 = vunpack.c.l.b16 %v134
    %v174 = vunpack.c.l.b16 %v135
    %v175 = vunpack.c.l.b16 %v136
    %v176 = vunpack.c.l.b16 %v137
    %v177 = vunpack.c.l.b16 %v138
    %v178 = vunpack.c.l.b16 %v139
    %v179 = vunpack.c.l.b16 %v140
    %v180 = vunpack.c.l.b16 %v141
    %v181 = vunpack.c.l.b16 %v142
    %v182 = vunpack.c.l.b16 %v143
    %v183 = vunpack.c.l.b16 %v144
    %v184 = vpack.c.b16 %v169, %v168
    %v185 = vpack.c.b16 %v171, %v170
    %v186 = vpack.c.b16 %v173, %v172
    %v187 = vpack.c.b16 %v175, %v174
    %v188 = vpack.c.b16 %v177, %v176
    %v189 = vpack.c.b16 %v179, %v178
    %v190 = vpack.c.b16 %v181, %v180
    %v191 = vpack.c.b16 %v183, %v182
    %200 = vmatprep.subr.bf16.mxu0 0
    %201 = vmatpush1.bf16.msra.mxu0 %v184
    %202 = vmatprep.subr.bf16.mxu0 0
    %203 = vmatpush1.bf16.msra.mxu0 %v185
    %204 = vmatprep.subr.bf16.mxu0 0
    %205 = vmatpush1.bf16.msra.mxu0 %v186
    %206 = vmatprep.subr.bf16.mxu0 0
    %207 = vmatpush1.bf16.msra.mxu0 %v187
    %208 = vmatprep.subr.bf16.mxu0 0
    %209 = vmatpush1.bf16.msra.mxu0 %v188
    %210 = vmatprep.subr.bf16.mxu0 0
    %211 = vmatpush1.bf16.msra.mxu0 %v189
    %212 = vmatprep.subr.bf16.mxu0 0
    %213 = vmatpush1.bf16.msra.mxu0 %v190
    %214 = vmatprep.subr.bf16.mxu0 0
    %215 = vmatpush1.bf16.msra.mxu0 %v191
    %216 = vmatprep.subr.bf16.mxu0 0
    %217 = vmatpush1.bf16.msra.mxu0 0
    %218 = vmatprep.subr.bf16.mxu0 0
    %219 = vmatpush1.bf16.msra.mxu0 0
    %220 = vmatprep.subr.bf16.mxu0 0
    %221 = vmatpush1.bf16.msra.mxu0 0
    %222 = vmatprep.subr.bf16.mxu0 0
    %223 = vmatpush1.bf16.msra.mxu0 0
    %224 = vmatprep.subr.bf16.mxu0 0
    %225 = vmatpush1.bf16.msra.mxu0 0
    %226 = vmatprep.subr.bf16.mxu0 0
    %227 = vmatpush1.bf16.msra.mxu0 0
    %228 = vmatprep.subr.bf16.mxu0 0
    %229 = vmatpush1.bf16.msra.mxu0 0
    %230 = vmatprep.subr.bf16.mxu0 0
    %231 = vmatpush1.bf16.msra.mxu0 0
    %232 = vmatprep.mubr.bf16.mxu0 0
    %233 = vmatmul.mubr.bf16.gmra.mrb[0].mxu0 %v125
    %v234 = vpop.f32.mrb[0].mxu0
    %v235 = vadd.f32 %v150, %v234
    %v236 = vpop.f32.mrb[0].mxu0
    %v237 = vpop.f32.mrb[0].mxu0
    %v238 = vadd.f32 %v150, %v237
    %v239 = vpop.f32.mrb[0].mxu0
    %240 = vdwg.mxu0
    %v241 = vpack.c.bf16 %v235, %v235
    %v242 = vpack.c.bf16 %v238, %v238
    %v243 = vld [vmem:[%s2] sm:$0x1]
    %v244 = vld [vmem:[%s2 + $0x1] sm:$0x1]
    %v247 = vlaneseq
    %v248 = vshrl.u32 %v247, 7
    %v249 = vsub.s32 0, %v248
    %v250 = vrot.slane %v243, %v249
    %v251 = vlaneseq
    %v252 = vshrl.u32 %v251, 7
    %v253 = vsub.s32 0, %v252
    %v254 = vrot.slane %v244, %v253
    %257 = vmatprep.subr.bf16.mxu0 0
    %258 = vmatpush1.bf16.xpose.msra.mxu0 %v241
    %259 = vmatprep.subr.bf16.mxu0 0
    %260 = vmatpush1.bf16.xpose.msra.mxu0 0
    %261 = vmatprep.subr.bf16.mxu0 0
    %262 = vmatpush1.bf16.xpose.msra.mxu0 0
    %263 = vmatprep.subr.bf16.mxu0 0
    %264 = vmatpush1.bf16.xpose.msra.mxu0 0
    %265 = vmatprep.subr.bf16.mxu0 0
    %266 = vmatpush1.bf16.xpose.msra.mxu0 0
    %267 = vmatprep.subr.bf16.mxu0 0
    %268 = vmatpush1.bf16.xpose.msra.mxu0 0
    %269 = vmatprep.subr.bf16.mxu0 0
    %270 = vmatpush1.bf16.xpose.msra.mxu0 0
    %271 = vmatprep.subr.bf16.mxu0 0
    %272 = vmatpush1.bf16.xpose.msra.mxu0 0
    %273 = vmatprep.subr.bf16.mxu0 0
    %274 = vmatpush1.bf16.xpose.msra.mxu0 0
    %275 = vmatprep.subr.bf16.mxu0 0
    %276 = vmatpush1.bf16.xpose.msra.mxu0 0
    %277 = vmatprep.subr.bf16.mxu0 0
    %278 = vmatpush1.bf16.xpose.msra.mxu0 0
    %279 = vmatprep.subr.bf16.mxu0 0
    %280 = vmatpush1.bf16.xpose.msra.mxu0 0
    %281 = vmatprep.subr.bf16.mxu0 0
    %282 = vmatpush1.bf16.xpose.msra.mxu0 0
    %283 = vmatprep.subr.bf16.mxu0 0
    %284 = vmatpush1.bf16.xpose.msra.mxu0 0
    %285 = vmatprep.subr.bf16.mxu0 0
    %286 = vmatpush1.bf16.xpose.msra.mxu0 0
    %287 = vmatprep.subr.bf16.mxu0 0
    %288 = vmatpush1.bf16.xpose.msra.mxu0 0
    %289 = vmatprep.mubr.bf16.mxu0 0
    %290 = vmatmul.mubr.bf16.gmra.mrb[0].mxu0 %v121
    %v291 = vpop.f32.mrb[0].mxu0
    %v292 = vadd.f32 %v250, %v291
    %v293 = vpop.f32.mrb[0].mxu0
    %v294 = vpop.f32.mrb[0].mxu0
    %v295 = vpop.f32.mrb[0].mxu0
    %296 = vdwg.mxu0
    %297 = vmatprep.subr.bf16.mxu0 0
    %298 = vmatpush1.bf16.xpose.msra.mxu0 %v242
    %299 = vmatprep.subr.bf16.mxu0 0
    %300 = vmatpush1.bf16.xpose.msra.mxu0 0
    %301 = vmatprep.subr.bf16.mxu0 0
    %302 = vmatpush1.bf16.xpose.msra.mxu0 0
    %303 = vmatprep.subr.bf16.mxu0 0
    %304 = vmatpush1.bf16.xpose.msra.mxu0 0
    %305 = vmatprep.subr.bf16.mxu0 0
    %306 = vmatpush1.bf16.xpose.msra.mxu0 0
    %307 = vmatprep.subr.bf16.mxu0 0
    %308 = vmatpush1.bf16.xpose.msra.mxu0 0
    %309 = vmatprep.subr.bf16.mxu0 0
    %310 = vmatpush1.bf16.xpose.msra.mxu0 0
    %311 = vmatprep.subr.bf16.mxu0 0
    %312 = vmatpush1.bf16.xpose.msra.mxu0 0
    %313 = vmatprep.subr.bf16.mxu0 0
    %314 = vmatpush1.bf16.xpose.msra.mxu0 0
    %315 = vmatprep.subr.bf16.mxu0 0
    %316 = vmatpush1.bf16.xpose.msra.mxu0 0
    %317 = vmatprep.subr.bf16.mxu0 0
    %318 = vmatpush1.bf16.xpose.msra.mxu0 0
    %319 = vmatprep.subr.bf16.mxu0 0
    %320 = vmatpush1.bf16.xpose.msra.mxu0 0
    %321 = vmatprep.subr.bf16.mxu0 0
    %322 = vmatpush1.bf16.xpose.msra.mxu0 0
    %323 = vmatprep.subr.bf16.mxu0 0
    %324 = vmatpush1.bf16.xpose.msra.mxu0 0
    %325 = vmatprep.subr.bf16.mxu0 0
    %326 = vmatpush1.bf16.xpose.msra.mxu0 0
    %327 = vmatprep.subr.bf16.mxu0 0
    %328 = vmatpush1.bf16.xpose.msra.mxu0 0
    %329 = vmatprep.mubr.bf16.mxu0 0
    %330 = vmatmul.mubr.bf16.gmra.mrb[0].mxu0 %v122
    %v331 = vpop.f32.mrb[0].mxu0
    %v332 = vadd.f32 %v254, %v331
    %v333 = vpop.f32.mrb[0].mxu0
    %v334 = vpop.f32.mrb[0].mxu0
    %v335 = vpop.f32.mrb[0].mxu0
    %336 = vdwg.mxu0
    %vm337 = vcmask 64512
    %v338 = vsel %vm337, %v292, -inf
    %339 = vmax.xlane.f32.xlu0 %v338
    %v340 = vpop.xlane.xlu0 %339
    %v341 = vsel %vm337, %v332, -inf
    %342 = vmax.xlane.f32.xlu0 %v341
    %v343 = vpop.xlane.xlu0 %342
    %v344 = vsub.f32 %v292, %v340
    %v345 = vsub.f32 %v332, %v343
    %v346 = vmul.f32 %v344, 1.442695
    %v347 = vpow.pop %v346
    %v348 = vmul.f32 %v345, 1.442695
    %v349 = vpow.pop %v348
    %v350 = vsel %vm337, %v347, 0.0
    %351 = vadd.xlane.f32.xlu0 %v350
    %v352 = vpop.xlane.xlu0 %351
    %v353 = vsel %vm337, %v349, 0.0
    %354 = vadd.xlane.f32.xlu0 %v353
    %v355 = vpop.xlane.xlu0 %354
    %v356 = vrcp.pop %v352
    %v357 = vrcp.pop %v355
    %v358 = vmul.f32 %v347, %v356
    %v359 = vmul.f32 %v349, %v357
    %v360 = vpack.c.bf16 %v358, %v358
    %v361 = vpack.c.bf16 %v359, %v359
    %v363 = vsel %vm337, %v360, 0
    %vm365 = vcmask 1043456
    %v367 = vsel %vm365, %v119, 0
    %369 = vmatprep.subr.bf16.mxu0 0
    %370 = vmatpush1.bf16.msra.mxu0 %v367
    %371 = vmatprep.subr.bf16.mxu0 0
    %372 = vmatpush1.bf16.msra.mxu0 0
    %373 = vmatprep.subr.bf16.mxu0 0
    %374 = vmatpush1.bf16.msra.mxu0 0
    %375 = vmatprep.subr.bf16.mxu0 0
    %376 = vmatpush1.bf16.msra.mxu0 0
    %377 = vmatprep.subr.bf16.mxu0 0
    %378 = vmatpush1.bf16.msra.mxu0 0
    %379 = vmatprep.subr.bf16.mxu0 0
    %380 = vmatpush1.bf16.msra.mxu0 0
    %381 = vmatprep.subr.bf16.mxu0 0
    %382 = vmatpush1.bf16.msra.mxu0 0
    %383 = vmatprep.subr.bf16.mxu0 0
    %384 = vmatpush1.bf16.msra.mxu0 0
    %385 = vmatprep.subr.bf16.mxu0 0
    %386 = vmatpush1.bf16.msra.mxu0 0
    %387 = vmatprep.subr.bf16.mxu0 0
    %388 = vmatpush1.bf16.msra.mxu0 0
    %389 = vmatprep.subr.bf16.mxu0 0
    %390 = vmatpush1.bf16.msra.mxu0 0
    %391 = vmatprep.subr.bf16.mxu0 0
    %392 = vmatpush1.bf16.msra.mxu0 0
    %393 = vmatprep.subr.bf16.mxu0 0
    %394 = vmatpush1.bf16.msra.mxu0 0
    %395 = vmatprep.subr.bf16.mxu0 0
    %396 = vmatpush1.bf16.msra.mxu0 0
    %397 = vmatprep.subr.bf16.mxu0 0
    %398 = vmatpush1.bf16.msra.mxu0 0
    %399 = vmatprep.subr.bf16.mxu0 0
    %400 = vmatpush1.bf16.msra.mxu0 0
    %401 = vmatprep.mubr.bf16.mxu0 0
    %402 = vmatmul.mubr.bf16.gmra.mrb[0].mxu0 %v363
    %v403 = vpop.f32.mrb[0].mxu0
    %v404 = vadd.f32 0.0, %v403
    %v405 = vpop.f32.mrb[0].mxu0
    %v406 = vpop.f32.mrb[0].mxu0
    %v407 = vpop.f32.mrb[0].mxu0
    %408 = vdwg.mxu0
    %v410 = vsel %vm337, %v361, 0
    %v413 = vsel %vm365, %v120, 0
    %415 = vmatprep.subr.bf16.mxu0 0
    %416 = vmatpush1.bf16.msra.mxu0 %v413
    %417 = vmatprep.subr.bf16.mxu0 0
    %418 = vmatpush1.bf16.msra.mxu0 0
    %419 = vmatprep.subr.bf16.mxu0 0
    %420 = vmatpush1.bf16.msra.mxu0 0
    %421 = vmatprep.subr.bf16.mxu0 0
    %422 = vmatpush1.bf16.msra.mxu0 0
    %423 = vmatprep.subr.bf16.mxu0 0
    %424 = vmatpush1.bf16.msra.mxu0 0
    %425 = vmatprep.subr.bf16.mxu0 0
    %426 = vmatpush1.bf16.msra.mxu0 0
    %427 = vmatprep.subr.bf16.mxu0 0
    %428 = vmatpush1.bf16.msra.mxu0 0
    %429 = vmatprep.subr.bf16.mxu0 0
    %430 = vmatpush1.bf16.msra.mxu0 0
    %431 = vmatprep.subr.bf16.mxu0 0
    %432 = vmatpush1.bf16.msra.mxu0 0
    %433 = vmatprep.subr.bf16.mxu0 0
    %434 = vmatpush1.bf16.msra.mxu0 0
    %435 = vmatprep.subr.bf16.mxu0 0
    %436 = vmatpush1.bf16.msra.mxu0 0
    %437 = vmatprep.subr.bf16.mxu0 0
    %438 = vmatpush1.bf16.msra.mxu0 0
    %439 = vmatprep.subr.bf16.mxu0 0
    %440 = vmatpush1.bf16.msra.mxu0 0
    %441 = vmatprep.subr.bf16.mxu0 0
    %442 = vmatpush1.bf16.msra.mxu0 0
    %443 = vmatprep.subr.bf16.mxu0 0
    %444 = vmatpush1.bf16.msra.mxu0 0
    %445 = vmatprep.subr.bf16.mxu0 0
    %446 = vmatpush1.bf16.msra.mxu0 0
    %447 = vmatprep.mubr.bf16.mxu0 0
    %448 = vmatmul.mubr.bf16.gmra.mrb[0].mxu0 %v410
    %v449 = vpop.f32.mrb[0].mxu0
    %v450 = vadd.f32 0.0, %v449
    %v451 = vpop.f32.mrb[0].mxu0
    %v452 = vpop.f32.mrb[0].mxu0
    %v453 = vpop.f32.mrb[0].mxu0
    %454 = vdwg.mxu0
    %v455 = vpack.c.bf16 %v450, %v404
    %v456 = vld [vmem:[#allocation8] sm:$0xf]
    %v457 = vld [vmem:[#allocation8 + $0x4] sm:$0xf]
    %v458 = vld [vmem:[#allocation8 + $0x8] sm:$0xf]
    %v459 = vld [vmem:[#allocation8 + $0xc] sm:$0xf]
    %v460 = vld [vmem:[#allocation8 + $0x10] sm:$0xf]
    %v461 = vld [vmem:[#allocation8 + $0x14] sm:$0xf]
    %v462 = vld [vmem:[#allocation8 + $0x18] sm:$0xf]
    %v463 = vld [vmem:[#allocation8 + $0x1c] sm:$0xf]
    %v464 = vld [vmem:[#allocation8 + $0x20] sm:$0xf]
    %v465 = vld [vmem:[#allocation8 + $0x24] sm:$0xf]
    %v466 = vld [vmem:[#allocation8 + $0x28] sm:$0xf]
    %v467 = vld [vmem:[#allocation8 + $0x2c] sm:$0xf]
    %v468 = vld [vmem:[#allocation8 + $0x30] sm:$0xf]
    %v469 = vld [vmem:[#allocation8 + $0x34] sm:$0xf]
    %v470 = vld [vmem:[#allocation8 + $0x38] sm:$0xf]
    %v471 = vld [vmem:[#allocation8 + $0x3c] sm:$0xf]
    %v472 = vld [vmem:[#allocation10] sm:$0xf]
    %v473 = vld [vmem:[#allocation10 + $0x4] sm:$0xf]
    %v474 = vld [vmem:[#allocation10 + $0x8] sm:$0xf]
    %v475 = vld [vmem:[#allocation10 + $0xc] sm:$0xf]
    %v476 = vld [vmem:[#allocation10 + $0x10] sm:$0xf]
    %v477 = vld [vmem:[#allocation10 + $0x14] sm:$0xf]
    %v478 = vld [vmem:[#allocation10 + $0x18] sm:$0xf]
    %v479 = vld [vmem:[#allocation10 + $0x1c] sm:$0xf]
    %v480 = vld [vmem:[#allocation10 + $0x20] sm:$0xf]
    %v481 = vld [vmem:[#allocation10 + $0x24] sm:$0xf]
    %v482 = vld [vmem:[#allocation10 + $0x28] sm:$0xf]
    %v483 = vld [vmem:[#allocation10 + $0x2c] sm:$0xf]
    %v484 = vld [vmem:[#allocation10 + $0x30] sm:$0xf]
    %v485 = vld [vmem:[#allocation10 + $0x34] sm:$0xf]
    %v486 = vld [vmem:[#allocation10 + $0x38] sm:$0xf]
    %v487 = vld [vmem:[#allocation10 + $0x3c] sm:$0xf]
    %v504 = vunpack.c.l.b16 %v472
    %v505 = vunpack.c.l.b16 %v473
    %v506 = vunpack.c.l.b16 %v474
    %v507 = vunpack.c.l.b16 %v475
    %v508 = vunpack.c.l.b16 %v476
    %v509 = vunpack.c.l.b16 %v477
    %v510 = vunpack.c.l.b16 %v478
    %v511 = vunpack.c.l.b16 %v479
    %v512 = vunpack.c.l.b16 %v480
    %v513 = vunpack.c.l.b16 %v481
    %v514 = vunpack.c.l.b16 %v482
    %v515 = vunpack.c.l.b16 %v483
    %v516 = vunpack.c.l.b16 %v484
    %v517 = vunpack.c.l.b16 %v485
    %v518 = vunpack.c.l.b16 %v486
    %v519 = vunpack.c.l.b16 %v487
    %v520 = vpack.c.b16 %v505, %v504
    %v521 = vpack.c.b16 %v507, %v506
    %v522 = vpack.c.b16 %v509, %v508
    %v523 = vpack.c.b16 %v511, %v510
    %v524 = vpack.c.b16 %v513, %v512
    %v525 = vpack.c.b16 %v515, %v514
    %v526 = vpack.c.b16 %v517, %v516
    %v527 = vpack.c.b16 %v519, %v518
    %536 = vmatprep.subr.bf16.mxu0 0
    %537 = vmatpush1.bf16.msra.mxu0 %v520
    %538 = vmatprep.subr.bf16.mxu0 0
    %539 = vmatpush1.bf16.msra.mxu0 %v521
    %540 = vmatprep.subr.bf16.mxu0 0
    %541 = vmatpush1.bf16.msra.mxu0 %v522
    %542 = vmatprep.subr.bf16.mxu0 0
    %543 = vmatpush1.bf16.msra.mxu0 %v523
    %544 = vmatprep.subr.bf16.mxu0 0
    %545 = vmatpush1.bf16.msra.mxu0 %v524
    %546 = vmatprep.subr.bf16.mxu0 0
    %547 = vmatpush1.bf16.msra.mxu0 %v525
    %548 = vmatprep.subr.bf16.mxu0 0
    %549 = vmatpush1.bf16.msra.mxu0 %v526
    %550 = vmatprep.subr.bf16.mxu0 0
    %551 = vmatpush1.bf16.msra.mxu0 %v527
    %552 = vmatprep.subr.bf16.mxu0 0
    %553 = vmatpush1.bf16.msra.mxu0 0
    %554 = vmatprep.subr.bf16.mxu0 0
    %555 = vmatpush1.bf16.msra.mxu0 0
    %556 = vmatprep.subr.bf16.mxu0 0
    %557 = vmatpush1.bf16.msra.mxu0 0
    %558 = vmatprep.subr.bf16.mxu0 0
    %559 = vmatpush1.bf16.msra.mxu0 0
    %560 = vmatprep.subr.bf16.mxu0 0
    %561 = vmatpush1.bf16.msra.mxu0 0
    %562 = vmatprep.subr.bf16.mxu0 0
    %563 = vmatpush1.bf16.msra.mxu0 0
    %564 = vmatprep.subr.bf16.mxu0 0
    %565 = vmatpush1.bf16.msra.mxu0 0
    %566 = vmatprep.subr.bf16.mxu0 0
    %567 = vmatpush1.bf16.msra.mxu0 0
    %568 = vmatprep.mubr.bf16.mxu0 0
    %569 = vmatmul.mubr.bf16.gmra.mrb[0].mxu0 %v128
    %v570 = vpop.f32.mrb[0].mxu0
    %v571 = vadd.f32 0.0, %v570
    %v572 = vpop.f32.mrb[0].mxu0
    %v573 = vpop.f32.mrb[0].mxu0
    %v574 = vadd.f32 0.0, %v573
    %v575 = vpop.f32.mrb[0].mxu0
    %576 = vdwg.mxu0
    %v593 = vunpack.c.l.b16 %v456
    %v594 = vunpack.c.l.b16 %v457
    %v595 = vunpack.c.l.b16 %v458
    %v596 = vunpack.c.l.b16 %v459
    %v597 = vunpack.c.l.b16 %v460
    %v598 = vunpack.c.l.b16 %v461
    %v599 = vunpack.c.l.b16 %v462
    %v600 = vunpack.c.l.b16 %v463
    %v601 = vunpack.c.l.b16 %v464
    %v602 = vunpack.c.l.b16 %v465
    %v603 = vunpack.c.l.b16 %v466
    %v604 = vunpack.c.l.b16 %v467
    %v605 = vunpack.c.l.b16 %v468
    %v606 = vunpack.c.l.b16 %v469
    %v607 = vunpack.c.l.b16 %v470
    %v608 = vunpack.c.l.b16 %v471
    %v609 = vpack.c.b16 %v594, %v593
    %v610 = vpack.c.b16 %v596, %v595
    %v611 = vpack.c.b16 %v598, %v597
    %v612 = vpack.c.b16 %v600, %v599
    %v613 = vpack.c.b16 %v602, %v601
    %v614 = vpack.c.b16 %v604, %v603
    %v615 = vpack.c.b16 %v606, %v605
    %v616 = vpack.c.b16 %v608, %v607
    %625 = vmatprep.subr.bf16.mxu0 0
    %626 = vmatpush1.bf16.msra.mxu0 %v609
    %627 = vmatprep.subr.bf16.mxu0 0
    %628 = vmatpush1.bf16.msra.mxu0 %v610
    %629 = vmatprep.subr.bf16.mxu0 0
    %630 = vmatpush1.bf16.msra.mxu0 %v611
    %631 = vmatprep.subr.bf16.mxu0 0
    %632 = vmatpush1.bf16.msra.mxu0 %v612
    %633 = vmatprep.subr.bf16.mxu0 0
    %634 = vmatpush1.bf16.msra.mxu0 %v613
    %635 = vmatprep.subr.bf16.mxu0 0
    %636 = vmatpush1.bf16.msra.mxu0 %v614
    %637 = vmatprep.subr.bf16.mxu0 0
    %638 = vmatpush1.bf16.msra.mxu0 %v615
    %639 = vmatprep.subr.bf16.mxu0 0
    %640 = vmatpush1.bf16.msra.mxu0 %v616
    %641 = vmatprep.subr.bf16.mxu0 0
    %642 = vmatpush1.bf16.msra.mxu0 0
    %643 = vmatprep.subr.bf16.mxu0 0
    %644 = vmatpush1.bf16.msra.mxu0 0
    %645 = vmatprep.subr.bf16.mxu0 0
    %646 = vmatpush1.bf16.msra.mxu0 0
    %647 = vmatprep.subr.bf16.mxu0 0
    %648 = vmatpush1.bf16.msra.mxu0 0
    %649 = vmatprep.subr.bf16.mxu0 0
    %650 = vmatpush1.bf16.msra.mxu0 0
    %651 = vmatprep.subr.bf16.mxu0 0
    %652 = vmatpush1.bf16.msra.mxu0 0
    %653 = vmatprep.subr.bf16.mxu0 0
    %654 = vmatpush1.bf16.msra.mxu0 0
    %655 = vmatprep.subr.bf16.mxu0 0
    %656 = vmatpush1.bf16.msra.mxu0 0
    %657 = vmatprep.mubr.bf16.mxu0 0
    %658 = vmatmul.mubr.bf16.gmra.mrb[0].mxu0 %v455
    %v659 = vpop.f32.mrb[0].mxu0
    %v660 = vadd.f32 %v571, %v659
    %v661 = vpop.f32.mrb[0].mxu0
    %v662 = vpop.f32.mrb[0].mxu0
    %v663 = vadd.f32 %v574, %v662
    %v664 = vpop.f32.mrb[0].mxu0
    %665 = vdwg.mxu0
    %v666 = vld [vmem:[%s7] sm:$0x1]
    %v668 = vlaneseq
    %v669 = vshrl.u32 %v668, 7
    %v670 = vsub.s32 0, %v669
    %v671 = vrot.slane %v666, %v670
    %v673 = vadd.f32 %v660, %v671
    %v674 = vadd.f32 %v663, %v671
    %v675 = vtanh.pop %v673
    %v676 = vtanh.pop %v674
    %v677 = vpack.c.bf16 %v676, %v675
    %v678 = vld [vmem:[#allocation11] sm:$0xf]
    %v679 = vld [vmem:[#allocation11 + $0x4] sm:$0xf]
    %v680 = vld [vmem:[#allocation11 + $0x8] sm:$0xf]
    %v681 = vld [vmem:[#allocation11 + $0xc] sm:$0xf]
    %v682 = vld [vmem:[#allocation11 + $0x10] sm:$0xf]
    %v683 = vld [vmem:[#allocation11 + $0x14] sm:$0xf]
    %v684 = vld [vmem:[#allocation11 + $0x18] sm:$0xf]
    %v685 = vld [vmem:[#allocation11 + $0x1c] sm:$0xf]
    %v686 = vld [vmem:[#allocation11 + $0x20] sm:$0xf]
    %v687 = vld [vmem:[#allocation11 + $0x24] sm:$0xf]
    %v688 = vld [vmem:[#allocation11 + $0x28] sm:$0xf]
    %v689 = vld [vmem:[#allocation11 + $0x2c] sm:$0xf]
    %v690 = vld [vmem:[#allocation11 + $0x30] sm:$0xf]
    %v691 = vld [vmem:[#allocation11 + $0x34] sm:$0xf]
    %v692 = vld [vmem:[#allocation11 + $0x38] sm:$0xf]
    %v693 = vld [vmem:[#allocation11 + $0x3c] sm:$0xf]
    %v694 = vld [vmem:[%s9] sm:$0x1]
    %v696 = vlaneseq
    %v697 = vshrl.u32 %v696, 7
    %v698 = vsub.s32 0, %v697
    %v699 = vrot.slane %v694, %v698
    %v717 = vunpack.c.l.b16 %v678
    %v718 = vunpack.c.l.b16 %v679
    %v719 = vunpack.c.l.b16 %v680
    %v720 = vunpack.c.l.b16 %v681
    %v721 = vunpack.c.l.b16 %v682
    %v722 = vunpack.c.l.b16 %v683
    %v723 = vunpack.c.l.b16 %v684
    %v724 = vunpack.c.l.b16 %v685
    %v725 = vunpack.c.l.b16 %v686
    %v726 = vunpack.c.l.b16 %v687
    %v727 = vunpack.c.l.b16 %v688
    %v728 = vunpack.c.l.b16 %v689
    %v729 = vunpack.c.l.b16 %v690
    %v730 = vunpack.c.l.b16 %v691
    %v731 = vunpack.c.l.b16 %v692
    %v732 = vunpack.c.l.b16 %v693
    %v733 = vpack.c.b16 %v718, %v717
    %v734 = vpack.c.b16 %v720, %v719
    %v735 = vpack.c.b16 %v722, %v721
    %v736 = vpack.c.b16 %v724, %v723
    %v737 = vpack.c.b16 %v726, %v725
    %v738 = vpack.c.b16 %v728, %v727
    %v739 = vpack.c.b16 %v730, %v729
    %v740 = vpack.c.b16 %v732, %v731
    %749 = vmatprep.subr.bf16.mxu0 0
    %750 = vmatpush1.bf16.msra.mxu0 %v733
    %751 = vmatprep.subr.bf16.mxu0 0
    %752 = vmatpush1.bf16.msra.mxu0 %v734
    %753 = vmatprep.subr.bf16.mxu0 0
    %754 = vmatpush1.bf16.msra.mxu0 %v735
    %755 = vmatprep.subr.bf16.mxu0 0
    %756 = vmatpush1.bf16.msra.mxu0 %v736
    %757 = vmatprep.subr.bf16.mxu0 0
    %758 = vmatpush1.bf16.msra.mxu0 %v737
    %759 = vmatprep.subr.bf16.mxu0 0
    %760 = vmatpush1.bf16.msra.mxu0 %v738
    %761 = vmatprep.subr.bf16.mxu0 0
    %762 = vmatpush1.bf16.msra.mxu0 %v739
    %763 = vmatprep.subr.bf16.mxu0 0
    %764 = vmatpush1.bf16.msra.mxu0 %v740
    %765 = vmatprep.subr.bf16.mxu0 0
    %766 = vmatpush1.bf16.msra.mxu0 0
    %767 = vmatprep.subr.bf16.mxu0 0
    %768 = vmatpush1.bf16.msra.mxu0 0
    %769 = vmatprep.subr.bf16.mxu0 0
    %770 = vmatpush1.bf16.msra.mxu0 0
    %771 = vmatprep.subr.bf16.mxu0 0
    %772 = vmatpush1.bf16.msra.mxu0 0
    %773 = vmatprep.subr.bf16.mxu0 0
    %774 = vmatpush1.bf16.msra.mxu0 0
    %775 = vmatprep.subr.bf16.mxu0 0
    %776 = vmatpush1.bf16.msra.mxu0 0
    %777 = vmatprep.subr.bf16.mxu0 0
    %778 = vmatpush1.bf16.msra.mxu0 0
    %779 = vmatprep.subr.bf16.mxu0 0
    %780 = vmatpush1.bf16.msra.mxu0 0
    %781 = vmatprep.mubr.bf16.mxu0 0
    %782 = vmatmul.mubr.bf16.gmra.mrb[0].mxu0 %v677
    %v783 = vpop.f32.mrb[0].mxu0
    %v784 = vadd.f32 %v699, %v783
    %v785 = vpop.f32.mrb[0].mxu0
    %v786 = vpop.f32.mrb[0].mxu0
    %v787 = vadd.f32 %v699, %v786
    %v788 = vpop.f32.mrb[0].mxu0
    %789 = vdwg.mxu0
    %790 = vst [vmem:[#allocation13] sm:$0xff] %v784
    %791 = vst [vmem:[#allocation13 + $0x8] sm:$0xff] %v787
    // Predicated region
    $region66: #{tpu_custom_call.1} parent=1 // pred_check
      _
    $region67: #{tpu_custom_call.1} parent=1 // pred_check_branch
      %793 = sbr.rel (0) target = $region69
    $region68: #{tpu_custom_call.1} parent=1 // pred_region
      %s795 = ssub.s32 256, 256
      %796 = vsyncadd [#allocation4], %s795
      %s797 = sshll.u32 [#allocation13], 4
      %s798 = int_to_ptr.vmem [resolvable:$true] %s797
      %803 = dma.vmem_to_hbm [thread:$0]  %s798, 256, %s10, [#allocation4], 128, 128, 8
    $region69: #{tpu_custom_call.1} parent=1 // pred_fallthru
      _
    // Predicated region
    $region70: #{tpu_custom_call.1} parent=1 // pred_check
      _
    $region71: #{tpu_custom_call.1} parent=1 // pred_check_branch
      %805 = sbr.rel (0) target = $region73
    $region72: #{tpu_custom_call.1} parent=1 // pred_region
      %806 = dma.done [#allocation4], 256
    $region73: #{tpu_custom_call.1} parent=1 // pred_fallthru
      _
    %807 = vsyncpa [#allocation3], 1
    %808 = vsyncpa [#allocation6], 1
    %809 = vsyncpa [#allocation9], 1
    %810 = vsyncpa [#allocation12], 1
    %811 = vsyncpa [#allocation4], 1

</llo_original>
